<compile_context>
chip_gen: v7x
topology: tpu7x:2x2x1
jax: 0.10.0
libtpu: 0.0.40
codegen_flags: <defaults>
</compile_context>

<pallas_src>
import functools

import jax
import jax.numpy as jnp
from jax.experimental import pallas as pl
from jax.experimental.pallas import tpu as pltpu


# Widths of the 8 returned tensors (enc_1, enc, mu, log_var, o, z, z_1) — dec
# has width `dim` and is appended at call time.
_FIXED_WIDTHS = (20, 15, 15, 15, 15, 15, 20)


def _round_up(n, m):
    return ((n + m - 1) // m) * m


def vae_kernel(x_ref, eps_ref,
               w1_ref, b1_ref, w2_ref, b2_ref,
               wmulv_ref, bmulv_ref,
               wz_ref, bz_ref, wz1_ref, bz1_ref, wd_ref, bd_ref,
               out_ref, *, dim, out_pad):
    x = x_ref[...]
    tb = x.shape[0]

    def linear(v, w_ref, b_ref):
        return jnp.dot(v, w_ref[...], preferred_element_type=jnp.float32) + b_ref[...]

    # ---- encoder ----
    enc_1 = linear(x, w1_ref, b1_ref)                          # (T, 20)
    enc = jnp.tanh(linear(jnp.tanh(enc_1), w2_ref, b2_ref))    # (T, 15)

    # ---- latent stats: fused mu|log_var projection (one (15, 30) matmul) ----
    stats = linear(enc, wmulv_ref, bmulv_ref)                  # (T, 30)
    mu = stats[:, :15]
    log_var = stats[:, 15:30]

    # ---- reparameterize: o = mu + eps * exp(log_var / 2) ----
    o = mu + eps_ref[...] * jnp.exp(log_var * 0.5)             # (T, 15)

    # ---- decoder ----
    z = linear(o, wz_ref, bz_ref)                              # (T, 15)
    z_1 = linear(jnp.tanh(z), wz1_ref, bz1_ref)                # (T, 20)
    dec = jax.nn.sigmoid(linear(jnp.tanh(z_1), wd_ref, bd_ref))  # (T, dim)

    # ---- single lane-dense store: pack all outputs into one padded slab ----
    used = sum(_FIXED_WIDTHS) + dim
    pieces = [enc_1, enc, mu, log_var, o, z, z_1, dec]
    if out_pad > used:
        pieces.append(jnp.zeros((tb, out_pad - used), jnp.float32))
    out_ref[...] = jnp.concatenate(pieces, axis=-1)


def vae_forward(x, eps, params, *, tile_b=1024):
    """Runs the fused VAE forward. Returns the 8 tensors of the PyTorch module."""
    B, dim = x.shape
    (w1, b1, w2, b2, wmu, bmu, wlv, blv, wz, bz, wz1, bz1, wd, bd) = params

    # Fuse the mu / log_var projections into one matmul: (15, 30) weight.
    wmulv = jnp.concatenate([wmu, wlv], axis=1)   # (15, 30)
    bmulv = jnp.concatenate([bmu, blv], axis=1)   # (1, 30)
    kparams = (w1, b1, w2, b2, wmulv, bmulv, wz, bz, wz1, bz1, wd, bd)

    widths = _FIXED_WIDTHS + (dim,)
    used = sum(widths)
    out_pad = _round_up(used, 128)                # lane-dense packed output slab

    # Batch tiling: tile_b multiple of 8; pad B up so every block is legal.
    tile_b = max(8, min(tile_b, _round_up(B, 8)))
    b_pad = _round_up(B, tile_b)
    if b_pad != B:
        x = jnp.pad(x, ((0, b_pad - B), (0, 0)))
        eps = jnp.pad(eps, ((0, b_pad - B), (0, 0)))

    grid = (b_pad // tile_b,)

    def batch_spec(feat):
        return pl.BlockSpec((tile_b, feat), lambda i: (i, 0))

    def const_spec(arr):
        # Full array as one block; constant index_map -> stays VMEM-resident.
        return pl.BlockSpec(arr.shape, lambda i: (0, 0))

    in_specs = [batch_spec(dim), batch_spec(15)] + [const_spec(p) for p in kparams]
    out_spec = pl.BlockSpec((tile_b, out_pad), lambda i: (i, 0))

    kernel = functools.partial(vae_kernel, dim=dim, out_pad=out_pad)

    slab = pl.pallas_call(
        kernel,
        out_shape=jax.ShapeDtypeStruct((b_pad, out_pad), jnp.float32),
        grid=grid,
        in_specs=in_specs,
        out_specs=out_spec,
        compiler_params=pltpu.CompilerParams(
            dimension_semantics=("parallel",)),
    )(x, eps, *kparams)

    # Split the packed slab back into the 8 module outputs (and drop padding).
    outs = []
    off = 0
    for w in widths:
        outs.append(slab[:B, off:off + w])
        off += w
    return tuple(outs)


def init_params(key, dim):
    """Deterministic init mimicking nn.Linear default (uniform +/- 1/sqrt(fan_in)).
    Weights are stored as [in, out]."""
    layer_dims = [
        (dim, 20),   # enc_1
        (20, 15),    # enc
        (15, 15),    # mu
        (15, 15),    # log_var
        (15, 15),    # z
        (15, 20),    # z_1
        (20, dim),   # dec
    ]
    params = []
    for (fan_in, fan_out) in layer_dims:
        key, kw, kb = jax.random.split(key, 3)
        bound = 1.0 / (fan_in ** 0.5)
        w = jax.random.uniform(kw, (fan_in, fan_out), jnp.float32, -bound, bound)
        b = jax.random.uniform(kb, (1, fan_out), jnp.float32, -bound, bound)
        params += [w, b]
    return tuple(params)


def vae_reference(x, eps, params):
    """Pure-JAX reference of the PyTorch forward for correctness check."""
    (w1, b1, w2, b2, wmu, bmu, wlv, blv, wz, bz, wz1, bz1, wd, bd) = params
    enc_1 = x @ w1 + b1
    enc = jnp.tanh(jnp.tanh(enc_1) @ w2 + b2)
    mu = enc @ wmu + bmu
    log_var = enc @ wlv + blv
    o = mu + eps * jnp.exp(log_var / 2)
    z = o @ wz + bz
    z_1 = jnp.tanh(z) @ wz1 + bz1
    dec = jax.nn.sigmoid(jnp.tanh(z_1) @ wd + bd)
    return (enc_1, enc, mu, log_var, o, z, z_1, dec)


if __name__ == "__main__":
    # Small but non-trivial shapes: B=40 with tile_b=16 -> batch padded to 48,
    # grid of 3 steps (exercises the pipeline and the batch-padding path).
    B, dim = 40, 16
    key = jax.random.PRNGKey(0)
    kx, keps, kp = jax.random.split(key, 3)

    x = jax.random.normal(kx, (B, dim), jnp.float32)
    eps = jax.random.normal(keps, (B, 15), jnp.float32)   # torch.randn_like(std)
    params = init_params(kp, dim)

    outs = jax.block_until_ready(vae_forward(x, eps, params, tile_b=16))
    refs = vae_reference(x, eps, params)

    names = ("enc_1", "enc", "mu", "log_var", "o", "z", "z_1", "dec")
    for name, got, ref in zip(names, outs, refs):
        assert got.shape == ref.shape, (name, got.shape, ref.shape)
        err = float(jnp.max(jnp.abs(got - ref)))
        assert err < 1e-4, (name, err)

    print("KERNEL_OK")
</pallas_src>

<mosaic_0001>
module attributes {stable_mosaic.version = 11 : i64} {
  func.func @vae_kernel(%arg0: i32, %arg1: memref<16x16xf32, #tpu.memory_space<vmem>>, %arg2: memref<16x15xf32, #tpu.memory_space<vmem>>, %arg3: memref<16x20xf32, #tpu.memory_space<vmem>>, %arg4: memref<1x20xf32, #tpu.memory_space<vmem>>, %arg5: memref<20x15xf32, #tpu.memory_space<vmem>>, %arg6: memref<1x15xf32, #tpu.memory_space<vmem>>, %arg7: memref<15x30xf32, #tpu.memory_space<vmem>>, %arg8: memref<1x30xf32, #tpu.memory_space<vmem>>, %arg9: memref<15x15xf32, #tpu.memory_space<vmem>>, %arg10: memref<1x15xf32, #tpu.memory_space<vmem>>, %arg11: memref<15x20xf32, #tpu.memory_space<vmem>>, %arg12: memref<1x20xf32, #tpu.memory_space<vmem>>, %arg13: memref<20x16xf32, #tpu.memory_space<vmem>>, %arg14: memref<1x16xf32, #tpu.memory_space<vmem>>, %arg15: memref<16x256xf32, #tpu.memory_space<vmem>>) attributes {dimension_semantics = [#tpu.dimension_semantics<parallel>], iteration_bounds = array<i64: 3>, scalar_prefetch = 0 : i64, scratch_operands = 0 : i64, tpu.core_type = #tpu.core_type<tc>, window_params = [{transform_indices = @transform_0, window_bounds = array<i64: 16, 16>}, {transform_indices = @transform_1, window_bounds = array<i64: 16, 15>}, {pipeline_mode = #tpu.pipeline_mode<synchronous>, transform_indices = @transform_2, window_bounds = array<i64: 16, 20>}, {pipeline_mode = #tpu.pipeline_mode<synchronous>, transform_indices = @transform_3, window_bounds = array<i64: 1, 20>}, {pipeline_mode = #tpu.pipeline_mode<synchronous>, transform_indices = @transform_4, window_bounds = array<i64: 20, 15>}, {pipeline_mode = #tpu.pipeline_mode<synchronous>, transform_indices = @transform_5, window_bounds = array<i64: 1, 15>}, {pipeline_mode = #tpu.pipeline_mode<synchronous>, transform_indices = @transform_6, window_bounds = array<i64: 15, 30>}, {pipeline_mode = #tpu.pipeline_mode<synchronous>, transform_indices = @transform_7, window_bounds = array<i64: 1, 30>}, {pipeline_mode = #tpu.pipeline_mode<synchronous>, transform_indices = @transform_8, window_bounds = array<i64: 15, 15>}, {pipeline_mode = #tpu.pipeline_mode<synchronous>, transform_indices = @transform_9, window_bounds = array<i64: 1, 15>}, {pipeline_mode = #tpu.pipeline_mode<synchronous>, transform_indices = @transform_10, window_bounds = array<i64: 15, 20>}, {pipeline_mode = #tpu.pipeline_mode<synchronous>, transform_indices = @transform_11, window_bounds = array<i64: 1, 20>}, {pipeline_mode = #tpu.pipeline_mode<synchronous>, transform_indices = @transform_12, window_bounds = array<i64: 20, 16>}, {pipeline_mode = #tpu.pipeline_mode<synchronous>, transform_indices = @transform_13, window_bounds = array<i64: 1, 16>}, {transform_indices = @transform_14, window_bounds = array<i64: 16, 256>}]} {
    %c0 = arith.constant 0 : index
    %c0_0 = arith.constant 0 : index
    %0 = vector.load %arg1[%c0, %c0_0] : memref<16x16xf32, #tpu.memory_space<vmem>>, vector<16x16xf32>
    %c0_1 = arith.constant 0 : index
    %c0_2 = arith.constant 0 : index
    %1 = vector.load %arg3[%c0_1, %c0_2] : memref<16x20xf32, #tpu.memory_space<vmem>>, vector<16x20xf32>
    %cst = arith.constant dense<0.000000e+00> : vector<16x20xf32>
    %2 = tpu.matmul %0, %1, %cst {dimension_numbers = #tpu.dot_dimension_numbers<[1], [0], [0], [1], [0, 0, 1, 1], [], []>} : vector<16x16xf32>, vector<16x20xf32>, vector<16x20xf32> -> vector<16x20xf32>
    %c0_3 = arith.constant 0 : index
    %c0_4 = arith.constant 0 : index
    %3 = vector.load %arg4[%c0_3, %c0_4] : memref<1x20xf32, #tpu.memory_space<vmem>>, vector<1x20xf32>
    %4 = vector.broadcast %3 : vector<1x20xf32> to vector<16x20xf32>
    %5 = arith.addf %2, %4 : vector<16x20xf32>
    %6 = math.tanh %5 : vector<16x20xf32>
    %c0_5 = arith.constant 0 : index
    %c0_6 = arith.constant 0 : index
    %7 = vector.load %arg5[%c0_5, %c0_6] : memref<20x15xf32, #tpu.memory_space<vmem>>, vector<20x15xf32>
    %cst_7 = arith.constant dense<0.000000e+00> : vector<16x15xf32>
    %8 = tpu.matmul %6, %7, %cst_7 {dimension_numbers = #tpu.dot_dimension_numbers<[1], [0], [0], [1], [0, 0, 1, 1], [], []>} : vector<16x20xf32>, vector<20x15xf32>, vector<16x15xf32> -> vector<16x15xf32>
    %c0_8 = arith.constant 0 : index
    %c0_9 = arith.constant 0 : index
    %9 = vector.load %arg6[%c0_8, %c0_9] : memref<1x15xf32, #tpu.memory_space<vmem>>, vector<1x15xf32>
    %10 = vector.broadcast %9 : vector<1x15xf32> to vector<16x15xf32>
    %11 = arith.addf %8, %10 : vector<16x15xf32>
    %12 = math.tanh %11 : vector<16x15xf32>
    %c0_10 = arith.constant 0 : index
    %c0_11 = arith.constant 0 : index
    %13 = vector.load %arg7[%c0_10, %c0_11] : memref<15x30xf32, #tpu.memory_space<vmem>>, vector<15x30xf32>
    %cst_12 = arith.constant dense<0.000000e+00> : vector<16x30xf32>
    %14 = tpu.matmul %12, %13, %cst_12 {dimension_numbers = #tpu.dot_dimension_numbers<[1], [0], [0], [1], [0, 0, 1, 1], [], []>} : vector<16x15xf32>, vector<15x30xf32>, vector<16x30xf32> -> vector<16x30xf32>
    %c0_13 = arith.constant 0 : index
    %c0_14 = arith.constant 0 : index
    %15 = vector.load %arg8[%c0_13, %c0_14] : memref<1x30xf32, #tpu.memory_space<vmem>>, vector<1x30xf32>
    %16 = vector.broadcast %15 : vector<1x30xf32> to vector<16x30xf32>
    %17 = arith.addf %14, %16 : vector<16x30xf32>
    %18 = vector.extract_strided_slice %17 {offsets = [0, 0], sizes = [16, 15], strides = [1, 1]} : vector<16x30xf32> to vector<16x15xf32>
    %19 = vector.extract_strided_slice %17 {offsets = [0, 15], sizes = [16, 15], strides = [1, 1]} : vector<16x30xf32> to vector<16x15xf32>
    %c0_15 = arith.constant 0 : index
    %c0_16 = arith.constant 0 : index
    %20 = vector.load %arg2[%c0_15, %c0_16] : memref<16x15xf32, #tpu.memory_space<vmem>>, vector<16x15xf32>
    %cst_17 = arith.constant 5.000000e-01 : f32
    %21 = vector.broadcast %cst_17 : f32 to vector<16x15xf32>
    %22 = arith.mulf %19, %21 : vector<16x15xf32>
    %23 = math.exp %22 : vector<16x15xf32>
    %24 = arith.mulf %20, %23 : vector<16x15xf32>
    %25 = arith.addf %18, %24 : vector<16x15xf32>
    %c0_18 = arith.constant 0 : index
    %c0_19 = arith.constant 0 : index
    %26 = vector.load %arg9[%c0_18, %c0_19] : memref<15x15xf32, #tpu.memory_space<vmem>>, vector<15x15xf32>
    %cst_20 = arith.constant dense<0.000000e+00> : vector<16x15xf32>
    %27 = tpu.matmul %25, %26, %cst_20 {dimension_numbers = #tpu.dot_dimension_numbers<[1], [0], [0], [1], [0, 0, 1, 1], [], []>} : vector<16x15xf32>, vector<15x15xf32>, vector<16x15xf32> -> vector<16x15xf32>
    %c0_21 = arith.constant 0 : index
    %c0_22 = arith.constant 0 : index
    %28 = vector.load %arg10[%c0_21, %c0_22] : memref<1x15xf32, #tpu.memory_space<vmem>>, vector<1x15xf32>
    %29 = vector.broadcast %28 : vector<1x15xf32> to vector<16x15xf32>
    %30 = arith.addf %27, %29 : vector<16x15xf32>
    %31 = math.tanh %30 : vector<16x15xf32>
    %c0_23 = arith.constant 0 : index
    %c0_24 = arith.constant 0 : index
    %32 = vector.load %arg11[%c0_23, %c0_24] : memref<15x20xf32, #tpu.memory_space<vmem>>, vector<15x20xf32>
    %cst_25 = arith.constant dense<0.000000e+00> : vector<16x20xf32>
    %33 = tpu.matmul %31, %32, %cst_25 {dimension_numbers = #tpu.dot_dimension_numbers<[1], [0], [0], [1], [0, 0, 1, 1], [], []>} : vector<16x15xf32>, vector<15x20xf32>, vector<16x20xf32> -> vector<16x20xf32>
    %c0_26 = arith.constant 0 : index
    %c0_27 = arith.constant 0 : index
    %34 = vector.load %arg12[%c0_26, %c0_27] : memref<1x20xf32, #tpu.memory_space<vmem>>, vector<1x20xf32>
    %35 = vector.broadcast %34 : vector<1x20xf32> to vector<16x20xf32>
    %36 = arith.addf %33, %35 : vector<16x20xf32>
    %37 = math.tanh %36 : vector<16x20xf32>
    %c0_28 = arith.constant 0 : index
    %c0_29 = arith.constant 0 : index
    %38 = vector.load %arg13[%c0_28, %c0_29] : memref<20x16xf32, #tpu.memory_space<vmem>>, vector<20x16xf32>
    %cst_30 = arith.constant dense<0.000000e+00> : vector<16x16xf32>
    %39 = tpu.matmul %37, %38, %cst_30 {dimension_numbers = #tpu.dot_dimension_numbers<[1], [0], [0], [1], [0, 0, 1, 1], [], []>} : vector<16x20xf32>, vector<20x16xf32>, vector<16x16xf32> -> vector<16x16xf32>
    %c0_31 = arith.constant 0 : index
    %c0_32 = arith.constant 0 : index
    %40 = vector.load %arg14[%c0_31, %c0_32] : memref<1x16xf32, #tpu.memory_space<vmem>>, vector<1x16xf32>
    %41 = vector.broadcast %40 : vector<1x16xf32> to vector<16x16xf32>
    %42 = arith.addf %39, %41 : vector<16x16xf32>
    %43 = arith.negf %42 : vector<16x16xf32>
    %44 = math.exp %43 : vector<16x16xf32>
    %cst_33 = arith.constant 1.000000e+00 : f32
    %45 = vector.broadcast %cst_33 : f32 to vector<16x16xf32>
    %46 = arith.addf %45, %44 : vector<16x16xf32>
    %47 = arith.divf %45, %46 : vector<16x16xf32>
    %cst_34 = arith.constant 0.000000e+00 : f32
    %48 = vector.broadcast %cst_34 : f32 to vector<16x125xf32>
    %49 = tpu.concatenate %5, %12, %18, %19, %25, %30, %36, %47, %48 in 1 : vector<16x20xf32>, vector<16x15xf32>, vector<16x15xf32>, vector<16x15xf32>, vector<16x15xf32>, vector<16x15xf32>, vector<16x20xf32>, vector<16x16xf32>, vector<16x125xf32> -> vector<16x256xf32>
    %c0_35 = arith.constant 0 : index
    %c0_36 = arith.constant 0 : index
    %50 = vector.load %arg15[%c0_35, %c0_36] : memref<16x256xf32, #tpu.memory_space<vmem>>, vector<16x256xf32>
    tpu.vector_store %arg15[%c0_35, %c0_36], %49 {strides = array<i32>} : memref<16x256xf32, #tpu.memory_space<vmem>>, vector<16x256xf32>,
    return
  }
  func.func @transform_0(%arg0: i32) -> (i32, i32) {
    %c0_i32 = arith.constant 0 : i32
    %c0_i32_0 = arith.constant 0 : i32
    return %arg0, %c0_i32 : i32, i32
  }
  func.func @transform_1(%arg0: i32) -> (i32, i32) {
    %c0_i32 = arith.constant 0 : i32
    %c0_i32_0 = arith.constant 0 : i32
    return %arg0, %c0_i32 : i32, i32
  }
  func.func @transform_2(%arg0: i32) -> (i32, i32) {
    %c0_i32 = arith.constant 0 : i32
    %c0_i32_0 = arith.constant 0 : i32
    %c0_i32_1 = arith.constant 0 : i32
    return %c0_i32, %c0_i32_0 : i32, i32
  }
  func.func @transform_3(%arg0: i32) -> (i32, i32) {
    %c0_i32 = arith.constant 0 : i32
    %c0_i32_0 = arith.constant 0 : i32
    %c0_i32_1 = arith.constant 0 : i32
    return %c0_i32, %c0_i32_0 : i32, i32
  }
  func.func @transform_4(%arg0: i32) -> (i32, i32) {
    %c0_i32 = arith.constant 0 : i32
    %c0_i32_0 = arith.constant 0 : i32
    %c0_i32_1 = arith.constant 0 : i32
    return %c0_i32, %c0_i32_0 : i32, i32
  }
  func.func @transform_5(%arg0: i32) -> (i32, i32) {
    %c0_i32 = arith.constant 0 : i32
    %c0_i32_0 = arith.constant 0 : i32
    %c0_i32_1 = arith.constant 0 : i32
    return %c0_i32, %c0_i32_0 : i32, i32
  }
  func.func @transform_6(%arg0: i32) -> (i32, i32) {
    %c0_i32 = arith.constant 0 : i32
    %c0_i32_0 = arith.constant 0 : i32
    %c0_i32_1 = arith.constant 0 : i32
    return %c0_i32, %c0_i32_0 : i32, i32
  }
  func.func @transform_7(%arg0: i32) -> (i32, i32) {
    %c0_i32 = arith.constant 0 : i32
    %c0_i32_0 = arith.constant 0 : i32
    %c0_i32_1 = arith.constant 0 : i32
    return %c0_i32, %c0_i32_0 : i32, i32
  }
  func.func @transform_8(%arg0: i32) -> (i32, i32) {
    %c0_i32 = arith.constant 0 : i32
    %c0_i32_0 = arith.constant 0 : i32
    %c0_i32_1 = arith.constant 0 : i32
    return %c0_i32, %c0_i32_0 : i32, i32
  }
  func.func @transform_9(%arg0: i32) -> (i32, i32) {
    %c0_i32 = arith.constant 0 : i32
    %c0_i32_0 = arith.constant 0 : i32
    %c0_i32_1 = arith.constant 0 : i32
    return %c0_i32, %c0_i32_0 : i32, i32
  }
  func.func @transform_10(%arg0: i32) -> (i32, i32) {
    %c0_i32 = arith.constant 0 : i32
    %c0_i32_0 = arith.constant 0 : i32
    %c0_i32_1 = arith.constant 0 : i32
    return %c0_i32, %c0_i32_0 : i32, i32
  }
  func.func @transform_11(%arg0: i32) -> (i32, i32) {
    %c0_i32 = arith.constant 0 : i32
    %c0_i32_0 = arith.constant 0 : i32
    %c0_i32_1 = arith.constant 0 : i32
    return %c0_i32, %c0_i32_0 : i32, i32
  }
  func.func @transform_12(%arg0: i32) -> (i32, i32) {
    %c0_i32 = arith.constant 0 : i32
    %c0_i32_0 = arith.constant 0 : i32
    %c0_i32_1 = arith.constant 0 : i32
    return %c0_i32, %c0_i32_0 : i32, i32
  }
  func.func @transform_13(%arg0: i32) -> (i32, i32) {
    %c0_i32 = arith.constant 0 : i32
    %c0_i32_0 = arith.constant 0 : i32
    %c0_i32_1 = arith.constant 0 : i32
    return %c0_i32, %c0_i32_0 : i32, i32
  }
  func.func @transform_14(%arg0: i32) -> (i32, i32) {
    %c0_i32 = arith.constant 0 : i32
    %c0_i32_0 = arith.constant 0 : i32
    return %arg0, %c0_i32 : i32, i32
  }
}

</mosaic_0001>

<llo_original>
// kernel: tpu_custom_call.1
$region0: #{tpu_custom_call.1}
  #allocation0 [shape = 'u32[]', space=smem, size = 0x4, offset = 0x4, fixed_abs, tag = 'smem constant byte address 0x4 - core index']
  #allocation1 [shape = 'u32[144,128]{1,0:T(1,128)}', space=vmem, size = 0x12000, scoped, tag = 'internal scratch']
  %s0 = inlined_call_operand.vmem [shape: f32[48,16], index: 0, kind: input, shape index: {}]
  %s1 = inlined_call_operand.vmem [shape: f32[48,15], index: 1, kind: input, shape index: {}]
  %s2 = inlined_call_operand.vmem [shape: f32[16,20], index: 2, kind: input, shape index: {}]
  %s3 = inlined_call_operand.vmem [shape: f32[1,20], index: 3, kind: input, shape index: {}]
  %s4 = inlined_call_operand.vmem [shape: f32[20,15], index: 4, kind: input, shape index: {}]
  %s5 = inlined_call_operand.vmem [shape: f32[1,15], index: 5, kind: input, shape index: {}]
  %s6 = inlined_call_operand.vmem [shape: f32[15,30], index: 6, kind: input, shape index: {}]
  %s7 = inlined_call_operand.vmem [shape: f32[1,30], index: 7, kind: input, shape index: {}]
  %s8 = inlined_call_operand.vmem [shape: f32[15,15], index: 8, kind: input, shape index: {}]
  %s9 = inlined_call_operand.vmem [shape: f32[1,15], index: 9, kind: input, shape index: {}]
  %s10 = inlined_call_operand.vmem [shape: f32[15,20], index: 10, kind: input, shape index: {}]
  %s11 = inlined_call_operand.vmem [shape: f32[1,20], index: 11, kind: input, shape index: {}]
  %s12 = inlined_call_operand.vmem [shape: f32[20,16], index: 12, kind: input, shape index: {}]
  %s13 = inlined_call_operand.vmem [shape: f32[1,16], index: 13, kind: input, shape index: {}]
  %s14 = inlined_call_operand.hbm [shape: f32[48,256], index: 14, kind: output, shape index: {}]
  %s15 = sld [smem:[#allocation0]]
  $region89: #{tpu_custom_call.1} parent=0
    _
  %s17 = ssub.s32 1, %s15
  %s18 = scalar_select 0, %s17, %s15
  $region1: #{tpu_custom_call.1} parent=0
    #allocation2 [shape = 'u8[32768]{0}', space=vmem, size = 0x8000, scoped, tag = 'output window, operand 0']
    #allocation3 [shape = 's32[2]{0}', space=sflag, size = 0x8, scoped, tag = 'scoped memory for tpu_custom_call.1']
    %19 = vsyncpa [#allocation3], 0
    %s20 = scalar_lea.sflag [#allocation3], 1
    %21 = vsyncpa %s20, 0
    loop: start=0, step=1, limit=5
    $region2: #{tpu_custom_call.1} parent=1 // loop_pre_header
      _
    $region3: #{tpu_custom_call.1} parent=1 // loop_header
      %s23 = sphi 0, %s27
      %p24 = scmp.ge.s32.totalorder %s23, 5
      %s33 = sphi 0, %s35
      %s36 = sphi 0, %s33
      %s37 = sphi 0, %s36
      %s53 = sphi 0, %s37
      %s59 = sphi 0, %s61
      %s62 = sphi 0, %s59
      %s63 = sphi 0, %s62
      %s79 = sphi 0, %s63
      %s83 = sphi 0, %s83
      %s85 = sphi 0, %s83
      %s86 = sphi 0, %s85
      %s100 = sphi 0, %s86
      %s104 = sphi 0, %s104
      %s106 = sphi 0, %s104
      %s107 = sphi 0, %s106
      %s121 = sphi 0, %s107
      %s125 = sphi 0, %s125
      %s127 = sphi 0, %s125
      %s128 = sphi 0, %s127
      %s142 = sphi 0, %s128
      %s146 = sphi 0, %s146
      %s148 = sphi 0, %s146
      %s149 = sphi 0, %s148
      %s163 = sphi 0, %s149
      %s167 = sphi 0, %s167
      %s169 = sphi 0, %s167
      %s170 = sphi 0, %s169
      %s184 = sphi 0, %s170
      %s188 = sphi 0, %s188
      %s190 = sphi 0, %s188
      %s191 = sphi 0, %s190
      %s205 = sphi 0, %s191
      %s209 = sphi 0, %s209
      %s211 = sphi 0, %s209
      %s212 = sphi 0, %s211
      %s226 = sphi 0, %s212
      %s230 = sphi 0, %s230
      %s232 = sphi 0, %s230
      %s233 = sphi 0, %s232
      %s247 = sphi 0, %s233
      %s251 = sphi 0, %s251
      %s253 = sphi 0, %s251
      %s254 = sphi 0, %s253
      %s268 = sphi 0, %s254
      %s272 = sphi 0, %s272
      %s274 = sphi 0, %s272
      %s275 = sphi 0, %s274
      %s289 = sphi 0, %s275
      %s293 = sphi 0, %s293
      %s295 = sphi 0, %s293
      %s296 = sphi 0, %s295
      %s310 = sphi 0, %s296
      %s314 = sphi 0, %s314
      %s316 = sphi 0, %s314
      %s317 = sphi 0, %s316
      %s331 = sphi 0, %s317
      %s337 = sphi 0, %s339
      %s340 = sphi 0, %s337
      %s341 = sphi 0, %s340
      %s357 = sphi 0, %s341
    $region4: #{tpu_custom_call.1} parent=1 // loop_header_branch
      %26 = sbr.rel (%p24) target = $region8
    $region5: #{tpu_custom_call.1} parent=1 // loop_body
      %s28 = ssub.s32 %s23, 1
      %s29 = ssub.s32 %s23, 2
      %s30 = sadd.s32 %s23, 1
      %s31 = ssub.s32 %s23, %s30
      %p32 = scmp.eq.s32.totalorder %s31, 0
      %s34 = sadd.s32 %s33, 1
      %s35 = scalar_select %p32, %s33, %s34
      %p38 = pneg %p32
      %p39 = scmp.eq.s32.totalorder %s23, 2
      %p40 = por %p38, %p39
      %p41 = scmp.ne.s32.totalorder %s33, %s36
      %p42 = scmp.eq.s32.totalorder %s23, 0
      %p43 = por %p41, %p42
      %p44 = scmp.ne.s32.totalorder %s33, %s36
      %p45 = scmp.eq.s32.totalorder %s28, 2
      %p46 = por %p44, %p45
      %p47 = scmp.ne.s32.totalorder %s36, %s37
      %p48 = scmp.eq.s32.totalorder %s28, 0
      %p49 = por %p47, %p48
      %p50 = scmp.ne.s32.totalorder %s36, %s37
      %p51 = scmp.eq.s32.totalorder %s29, 2
      %p52 = por %p50, %p51
      %p54 = scmp.ne.s32.totalorder %s37, %s53
      %p55 = scmp.eq.s32.totalorder %s29, 0
      %p56 = por %p54, %p55
      %s57 = ssub.s32 %s23, %s30
      %p58 = scmp.eq.s32.totalorder %s57, 0
      %s60 = sadd.s32 %s59, 1
      %s61 = scalar_select %p58, %s59, %s60
      %p64 = pneg %p58
      %p65 = scmp.eq.s32.totalorder %s23, 2
      %p66 = por %p64, %p65
      %p67 = scmp.ne.s32.totalorder %s59, %s62
      %p68 = scmp.eq.s32.totalorder %s23, 0
      %p69 = por %p67, %p68
      %p70 = scmp.ne.s32.totalorder %s59, %s62
      %p71 = scmp.eq.s32.totalorder %s28, 2
      %p72 = por %p70, %p71
      %p73 = scmp.ne.s32.totalorder %s62, %s63
      %p74 = scmp.eq.s32.totalorder %s28, 0
      %p75 = por %p73, %p74
      %p76 = scmp.ne.s32.totalorder %s62, %s63
      %p77 = scmp.eq.s32.totalorder %s29, 2
      %p78 = por %p76, %p77
      %p80 = scmp.ne.s32.totalorder %s63, %s79
      %p81 = scmp.eq.s32.totalorder %s29, 0
      %p82 = por %p80, %p81
      %s84 = sadd.s32 %s83, 1
      %p87 = scmp.eq.s32.totalorder %s23, 2
      %p88 = scmp.ne.s32.totalorder %s83, %s85
      %p89 = scmp.eq.s32.totalorder %s23, 0
      %p90 = por %p88, %p89
      %p91 = scmp.ne.s32.totalorder %s83, %s85
      %p92 = scmp.eq.s32.totalorder %s28, 2
      %p93 = por %p91, %p92
      %p94 = scmp.ne.s32.totalorder %s85, %s86
      %p95 = scmp.eq.s32.totalorder %s28, 0
      %p96 = por %p94, %p95
      %p97 = scmp.ne.s32.totalorder %s85, %s86
      %p98 = scmp.eq.s32.totalorder %s29, 2
      %p99 = por %p97, %p98
      %p101 = scmp.ne.s32.totalorder %s86, %s100
      %p102 = scmp.eq.s32.totalorder %s29, 0
      %p103 = por %p101, %p102
      %s105 = sadd.s32 %s104, 1
      %p108 = scmp.eq.s32.totalorder %s23, 2
      %p109 = scmp.ne.s32.totalorder %s104, %s106
      %p110 = scmp.eq.s32.totalorder %s23, 0
      %p111 = por %p109, %p110
      %p112 = scmp.ne.s32.totalorder %s104, %s106
      %p113 = scmp.eq.s32.totalorder %s28, 2
      %p114 = por %p112, %p113
      %p115 = scmp.ne.s32.totalorder %s106, %s107
      %p116 = scmp.eq.s32.totalorder %s28, 0
      %p117 = por %p115, %p116
      %p118 = scmp.ne.s32.totalorder %s106, %s107
      %p119 = scmp.eq.s32.totalorder %s29, 2
      %p120 = por %p118, %p119
      %p122 = scmp.ne.s32.totalorder %s107, %s121
      %p123 = scmp.eq.s32.totalorder %s29, 0
      %p124 = por %p122, %p123
      %s126 = sadd.s32 %s125, 1
      %p129 = scmp.eq.s32.totalorder %s23, 2
      %p130 = scmp.ne.s32.totalorder %s125, %s127
      %p131 = scmp.eq.s32.totalorder %s23, 0
      %p132 = por %p130, %p131
      %p133 = scmp.ne.s32.totalorder %s125, %s127
      %p134 = scmp.eq.s32.totalorder %s28, 2
      %p135 = por %p133, %p134
      %p136 = scmp.ne.s32.totalorder %s127, %s128
      %p137 = scmp.eq.s32.totalorder %s28, 0
      %p138 = por %p136, %p137
      %p139 = scmp.ne.s32.totalorder %s127, %s128
      %p140 = scmp.eq.s32.totalorder %s29, 2
      %p141 = por %p139, %p140
      %p143 = scmp.ne.s32.totalorder %s128, %s142
      %p144 = scmp.eq.s32.totalorder %s29, 0
      %p145 = por %p143, %p144
      %s147 = sadd.s32 %s146, 1
      %p150 = scmp.eq.s32.totalorder %s23, 2
      %p151 = scmp.ne.s32.totalorder %s146, %s148
      %p152 = scmp.eq.s32.totalorder %s23, 0
      %p153 = por %p151, %p152
      %p154 = scmp.ne.s32.totalorder %s146, %s148
      %p155 = scmp.eq.s32.totalorder %s28, 2
      %p156 = por %p154, %p155
      %p157 = scmp.ne.s32.totalorder %s148, %s149
      %p158 = scmp.eq.s32.totalorder %s28, 0
      %p159 = por %p157, %p158
      %p160 = scmp.ne.s32.totalorder %s148, %s149
      %p161 = scmp.eq.s32.totalorder %s29, 2
      %p162 = por %p160, %p161
      %p164 = scmp.ne.s32.totalorder %s149, %s163
      %p165 = scmp.eq.s32.totalorder %s29, 0
      %p166 = por %p164, %p165
      %s168 = sadd.s32 %s167, 1
      %p171 = scmp.eq.s32.totalorder %s23, 2
      %p172 = scmp.ne.s32.totalorder %s167, %s169
      %p173 = scmp.eq.s32.totalorder %s23, 0
      %p174 = por %p172, %p173
      %p175 = scmp.ne.s32.totalorder %s167, %s169
      %p176 = scmp.eq.s32.totalorder %s28, 2
      %p177 = por %p175, %p176
      %p178 = scmp.ne.s32.totalorder %s169, %s170
      %p179 = scmp.eq.s32.totalorder %s28, 0
      %p180 = por %p178, %p179
      %p181 = scmp.ne.s32.totalorder %s169, %s170
      %p182 = scmp.eq.s32.totalorder %s29, 2
      %p183 = por %p181, %p182
      %p185 = scmp.ne.s32.totalorder %s170, %s184
      %p186 = scmp.eq.s32.totalorder %s29, 0
      %p187 = por %p185, %p186
      %s189 = sadd.s32 %s188, 1
      %p192 = scmp.eq.s32.totalorder %s23, 2
      %p193 = scmp.ne.s32.totalorder %s188, %s190
      %p194 = scmp.eq.s32.totalorder %s23, 0
      %p195 = por %p193, %p194
      %p196 = scmp.ne.s32.totalorder %s188, %s190
      %p197 = scmp.eq.s32.totalorder %s28, 2
      %p198 = por %p196, %p197
      %p199 = scmp.ne.s32.totalorder %s190, %s191
      %p200 = scmp.eq.s32.totalorder %s28, 0
      %p201 = por %p199, %p200
      %p202 = scmp.ne.s32.totalorder %s190, %s191
      %p203 = scmp.eq.s32.totalorder %s29, 2
      %p204 = por %p202, %p203
      %p206 = scmp.ne.s32.totalorder %s191, %s205
      %p207 = scmp.eq.s32.totalorder %s29, 0
      %p208 = por %p206, %p207
      %s210 = sadd.s32 %s209, 1
      %p213 = scmp.eq.s32.totalorder %s23, 2
      %p214 = scmp.ne.s32.totalorder %s209, %s211
      %p215 = scmp.eq.s32.totalorder %s23, 0
      %p216 = por %p214, %p215
      %p217 = scmp.ne.s32.totalorder %s209, %s211
      %p218 = scmp.eq.s32.totalorder %s28, 2
      %p219 = por %p217, %p218
      %p220 = scmp.ne.s32.totalorder %s211, %s212
      %p221 = scmp.eq.s32.totalorder %s28, 0
      %p222 = por %p220, %p221
      %p223 = scmp.ne.s32.totalorder %s211, %s212
      %p224 = scmp.eq.s32.totalorder %s29, 2
      %p225 = por %p223, %p224
      %p227 = scmp.ne.s32.totalorder %s212, %s226
      %p228 = scmp.eq.s32.totalorder %s29, 0
      %p229 = por %p227, %p228
      %s231 = sadd.s32 %s230, 1
      %p234 = scmp.eq.s32.totalorder %s23, 2
      %p235 = scmp.ne.s32.totalorder %s230, %s232
      %p236 = scmp.eq.s32.totalorder %s23, 0
      %p237 = por %p235, %p236
      %p238 = scmp.ne.s32.totalorder %s230, %s232
      %p239 = scmp.eq.s32.totalorder %s28, 2
      %p240 = por %p238, %p239
      %p241 = scmp.ne.s32.totalorder %s232, %s233
      %p242 = scmp.eq.s32.totalorder %s28, 0
      %p243 = por %p241, %p242
      %p244 = scmp.ne.s32.totalorder %s232, %s233
      %p245 = scmp.eq.s32.totalorder %s29, 2
      %p246 = por %p244, %p245
      %p248 = scmp.ne.s32.totalorder %s233, %s247
      %p249 = scmp.eq.s32.totalorder %s29, 0
      %p250 = por %p248, %p249
      %s252 = sadd.s32 %s251, 1
      %p255 = scmp.eq.s32.totalorder %s23, 2
      %p256 = scmp.ne.s32.totalorder %s251, %s253
      %p257 = scmp.eq.s32.totalorder %s23, 0
      %p258 = por %p256, %p257
      %p259 = scmp.ne.s32.totalorder %s251, %s253
      %p260 = scmp.eq.s32.totalorder %s28, 2
      %p261 = por %p259, %p260
      %p262 = scmp.ne.s32.totalorder %s253, %s254
      %p263 = scmp.eq.s32.totalorder %s28, 0
      %p264 = por %p262, %p263
      %p265 = scmp.ne.s32.totalorder %s253, %s254
      %p266 = scmp.eq.s32.totalorder %s29, 2
      %p267 = por %p265, %p266
      %p269 = scmp.ne.s32.totalorder %s254, %s268
      %p270 = scmp.eq.s32.totalorder %s29, 0
      %p271 = por %p269, %p270
      %s273 = sadd.s32 %s272, 1
      %p276 = scmp.eq.s32.totalorder %s23, 2
      %p277 = scmp.ne.s32.totalorder %s272, %s274
      %p278 = scmp.eq.s32.totalorder %s23, 0
      %p279 = por %p277, %p278
      %p280 = scmp.ne.s32.totalorder %s272, %s274
      %p281 = scmp.eq.s32.totalorder %s28, 2
      %p282 = por %p280, %p281
      %p283 = scmp.ne.s32.totalorder %s274, %s275
      %p284 = scmp.eq.s32.totalorder %s28, 0
      %p285 = por %p283, %p284
      %p286 = scmp.ne.s32.totalorder %s274, %s275
      %p287 = scmp.eq.s32.totalorder %s29, 2
      %p288 = por %p286, %p287
      %p290 = scmp.ne.s32.totalorder %s275, %s289
      %p291 = scmp.eq.s32.totalorder %s29, 0
      %p292 = por %p290, %p291
      %s294 = sadd.s32 %s293, 1
      %p297 = scmp.eq.s32.totalorder %s23, 2
      %p298 = scmp.ne.s32.totalorder %s293, %s295
      %p299 = scmp.eq.s32.totalorder %s23, 0
      %p300 = por %p298, %p299
      %p301 = scmp.ne.s32.totalorder %s293, %s295
      %p302 = scmp.eq.s32.totalorder %s28, 2
      %p303 = por %p301, %p302
      %p304 = scmp.ne.s32.totalorder %s295, %s296
      %p305 = scmp.eq.s32.totalorder %s28, 0
      %p306 = por %p304, %p305
      %p307 = scmp.ne.s32.totalorder %s295, %s296
      %p308 = scmp.eq.s32.totalorder %s29, 2
      %p309 = por %p307, %p308
      %p311 = scmp.ne.s32.totalorder %s296, %s310
      %p312 = scmp.eq.s32.totalorder %s29, 0
      %p313 = por %p311, %p312
      %s315 = sadd.s32 %s314, 1
      %p318 = scmp.eq.s32.totalorder %s23, 2
      %p319 = scmp.ne.s32.totalorder %s314, %s316
      %p320 = scmp.eq.s32.totalorder %s23, 0
      %p321 = por %p319, %p320
      %p322 = scmp.ne.s32.totalorder %s314, %s316
      %p323 = scmp.eq.s32.totalorder %s28, 2
      %p324 = por %p322, %p323
      %p325 = scmp.ne.s32.totalorder %s316, %s317
      %p326 = scmp.eq.s32.totalorder %s28, 0
      %p327 = por %p325, %p326
      %p328 = scmp.ne.s32.totalorder %s316, %s317
      %p329 = scmp.eq.s32.totalorder %s29, 2
      %p330 = por %p328, %p329
      %p332 = scmp.ne.s32.totalorder %s317, %s331
      %p333 = scmp.eq.s32.totalorder %s29, 0
      %p334 = por %p332, %p333
      %s335 = ssub.s32 %s23, %s30
      %p336 = scmp.eq.s32.totalorder %s335, 0
      %s338 = sadd.s32 %s337, 1
      %s339 = scalar_select %p336, %s337, %s338
      %p342 = pneg %p336
      %p343 = scmp.eq.s32.totalorder %s23, 2
      %p344 = por %p342, %p343
      %p345 = scmp.ne.s32.totalorder %s337, %s340
      %p346 = scmp.eq.s32.totalorder %s23, 0
      %p347 = por %p345, %p346
      %p348 = scmp.ne.s32.totalorder %s337, %s340
      %p349 = scmp.eq.s32.totalorder %s28, 2
      %p350 = por %p348, %p349
      %p351 = scmp.ne.s32.totalorder %s340, %s341
      %p352 = scmp.eq.s32.totalorder %s28, 0
      %p353 = por %p351, %p352
      %p354 = scmp.ne.s32.totalorder %s340, %s341
      %p355 = scmp.eq.s32.totalorder %s29, 2
      %p356 = por %p354, %p355
      %p358 = scmp.ne.s32.totalorder %s341, %s357
      %p359 = scmp.eq.s32.totalorder %s29, 0
      %p360 = por %p358, %p359
      %p361 = scmp.le.s32.totalorder 1, %s23
      %p362 = scmp.lt.s32.totalorder %s23, 4
      %p363 = pnand %p361, %p362
      %p364 = pneg %p363
      // Predicated region
      $region9: #{tpu_custom_call.1} parent=5 // pred_check
        _
      $region10: #{tpu_custom_call.1} parent=5 // pred_check_branch
        %366 = sbr.rel (%p363) target = $region12
      $region11: #{tpu_custom_call.1} parent=5 // pred_region
        %s367 = ssub.s32 %s23, 1
        // Predicated region
        $region13: #{tpu_custom_call.1} parent=11 // pred_check
          %p368 = pneg %p96
        $region14: #{tpu_custom_call.1} parent=11 // pred_check_branch
          %370 = sbr.rel (%p368) target = $region16
        $region15: #{tpu_custom_call.1} parent=11 // pred_region
          _
        $region16: #{tpu_custom_call.1} parent=11 // pred_fallthru
          _
        // Predicated region
        $region17: #{tpu_custom_call.1} parent=11 // pred_check
          %p371 = pneg %p117
        $region18: #{tpu_custom_call.1} parent=11 // pred_check_branch
          %373 = sbr.rel (%p371) target = $region20
        $region19: #{tpu_custom_call.1} parent=11 // pred_region
          _
        $region20: #{tpu_custom_call.1} parent=11 // pred_fallthru
          _
        // Predicated region
        $region21: #{tpu_custom_call.1} parent=11 // pred_check
          %p374 = pneg %p138
        $region22: #{tpu_custom_call.1} parent=11 // pred_check_branch
          %376 = sbr.rel (%p374) target = $region24
        $region23: #{tpu_custom_call.1} parent=11 // pred_region
          _
        $region24: #{tpu_custom_call.1} parent=11 // pred_fallthru
          _
        // Predicated region
        $region25: #{tpu_custom_call.1} parent=11 // pred_check
          %p377 = pneg %p159
        $region26: #{tpu_custom_call.1} parent=11 // pred_check_branch
          %379 = sbr.rel (%p377) target = $region28
        $region27: #{tpu_custom_call.1} parent=11 // pred_region
          _
        $region28: #{tpu_custom_call.1} parent=11 // pred_fallthru
          _
        // Predicated region
        $region29: #{tpu_custom_call.1} parent=11 // pred_check
          %p380 = pneg %p180
        $region30: #{tpu_custom_call.1} parent=11 // pred_check_branch
          %382 = sbr.rel (%p380) target = $region32
        $region31: #{tpu_custom_call.1} parent=11 // pred_region
          _
        $region32: #{tpu_custom_call.1} parent=11 // pred_fallthru
          _
        // Predicated region
        $region33: #{tpu_custom_call.1} parent=11 // pred_check
          %p383 = pneg %p201
        $region34: #{tpu_custom_call.1} parent=11 // pred_check_branch
          %385 = sbr.rel (%p383) target = $region36
        $region35: #{tpu_custom_call.1} parent=11 // pred_region
          _
        $region36: #{tpu_custom_call.1} parent=11 // pred_fallthru
          _
        // Predicated region
        $region37: #{tpu_custom_call.1} parent=11 // pred_check
          %p386 = pneg %p222
        $region38: #{tpu_custom_call.1} parent=11 // pred_check_branch
          %388 = sbr.rel (%p386) target = $region40
        $region39: #{tpu_custom_call.1} parent=11 // pred_region
          _
        $region40: #{tpu_custom_call.1} parent=11 // pred_fallthru
          _
        // Predicated region
        $region41: #{tpu_custom_call.1} parent=11 // pred_check
          %p389 = pneg %p243
        $region42: #{tpu_custom_call.1} parent=11 // pred_check_branch
          %391 = sbr.rel (%p389) target = $region44
        $region43: #{tpu_custom_call.1} parent=11 // pred_region
          _
        $region44: #{tpu_custom_call.1} parent=11 // pred_fallthru
          _
        // Predicated region
        $region45: #{tpu_custom_call.1} parent=11 // pred_check
          %p392 = pneg %p264
        $region46: #{tpu_custom_call.1} parent=11 // pred_check_branch
          %394 = sbr.rel (%p392) target = $region48
        $region47: #{tpu_custom_call.1} parent=11 // pred_region
          _
        $region48: #{tpu_custom_call.1} parent=11 // pred_fallthru
          _
        // Predicated region
        $region49: #{tpu_custom_call.1} parent=11 // pred_check
          %p395 = pneg %p285
        $region50: #{tpu_custom_call.1} parent=11 // pred_check_branch
          %397 = sbr.rel (%p395) target = $region52
        $region51: #{tpu_custom_call.1} parent=11 // pred_region
          _
        $region52: #{tpu_custom_call.1} parent=11 // pred_fallthru
          _
        // Predicated region
        $region53: #{tpu_custom_call.1} parent=11 // pred_check
          %p398 = pneg %p306
        $region54: #{tpu_custom_call.1} parent=11 // pred_check_branch
          %400 = sbr.rel (%p398) target = $region56
        $region55: #{tpu_custom_call.1} parent=11 // pred_region
          _
        $region56: #{tpu_custom_call.1} parent=11 // pred_fallthru
          _
        // Predicated region
        $region57: #{tpu_custom_call.1} parent=11 // pred_check
          %p401 = pneg %p327
        $region58: #{tpu_custom_call.1} parent=11 // pred_check_branch
          %403 = sbr.rel (%p401) target = $region60
        $region59: #{tpu_custom_call.1} parent=11 // pred_region
          _
        $region60: #{tpu_custom_call.1} parent=11 // pred_fallthru
          _
      $region12: #{tpu_custom_call.1} parent=5 // pred_fallthru
        _
      %p404 = scmp.lt.s32.totalorder %s23, 3
      // Predicated region
      $region61: #{tpu_custom_call.1} parent=5 // pred_check
        %p405 = pneg %p404
      $region62: #{tpu_custom_call.1} parent=5 // pred_check_branch
        %407 = sbr.rel (%p405) target = $region64
      $region63: #{tpu_custom_call.1} parent=5 // pred_region
        // Predicated region
        $region65: #{tpu_custom_call.1} parent=63 // pred_check
          %p408 = pneg %p43
        $region66: #{tpu_custom_call.1} parent=63 // pred_check_branch
          %410 = sbr.rel (%p408) target = $region68
        $region67: #{tpu_custom_call.1} parent=63 // pred_region
          %s411 = smul.u32 2, %s23
          %p412 = scmp.lt.s32.totalorder %s411, 5
          %s413 = scalar_select %p412, %s411, 5
          %s414 = smul.addr %s413, 8
          %s415 = scalar_lea.vmem %s0, %s414
          %s416 = smul.u32 2, %s23
        $region68: #{tpu_custom_call.1} parent=63 // pred_fallthru
          _
        // Predicated region
        $region69: #{tpu_custom_call.1} parent=63 // pred_check
          %p417 = pneg %p69
        $region70: #{tpu_custom_call.1} parent=63 // pred_check_branch
          %419 = sbr.rel (%p417) target = $region72
        $region71: #{tpu_custom_call.1} parent=63 // pred_region
          %s420 = smul.u32 2, %s23
          %p421 = scmp.lt.s32.totalorder %s420, 5
          %s422 = scalar_select %p421, %s420, 5
          %s423 = smul.addr %s422, 8
          %s424 = scalar_lea.vmem %s1, %s423
          %s425 = smul.u32 2, %s23
        $region72: #{tpu_custom_call.1} parent=63 // pred_fallthru
          _
      $region64: #{tpu_custom_call.1} parent=5 // pred_fallthru
        _
      %p426 = scmp.le.s32.totalorder 1, %s23
      %p427 = scmp.lt.s32.totalorder %s23, 4
      %p428 = pnand %p426, %p427
      %p429 = pneg %p428
      // Predicated region
      $region73: #{tpu_custom_call.1} parent=5 // pred_check
        _
      $region74: #{tpu_custom_call.1} parent=5 // pred_check_branch
        %431 = sbr.rel (%p428) target = $region76
      $region75: #{tpu_custom_call.1} parent=5 // pred_region
        %s432 = ssub.s32 %s23, 1
        %s433 = smul.u32 2, %s28
        %p434 = scmp.lt.s32.totalorder %s433, 5
        %s435 = scalar_select %p434, %s433, 5
        %s436 = smul.addr %s435, 8
        %s437 = scalar_lea.vmem %s0, %s436
        %p438 = pneg %p49
        %p439 = pneg %p46
        %s440 = smul.u32 2, %s28
        %p441 = scmp.lt.s32.totalorder %s440, 5
        %s442 = scalar_select %p441, %s440, 5
        %s443 = smul.addr %s442, 8
        %s444 = scalar_lea.vmem %s1, %s443
        %p445 = pneg %p75
        %p446 = pneg %p72
        %p447 = pneg %p96
        %p448 = pneg %p93
        %p449 = pneg %p117
        %p450 = pneg %p114
        %p451 = pneg %p138
        %p452 = pneg %p135
        %p453 = pneg %p159
        %p454 = pneg %p156
        %p455 = pneg %p180
        %p456 = pneg %p177
        %p457 = pneg %p201
        %p458 = pneg %p198
        %p459 = pneg %p222
        %p460 = pneg %p219
        %p461 = pneg %p243
        %p462 = pneg %p240
        %p463 = pneg %p264
        %p464 = pneg %p261
        %p465 = pneg %p285
        %p466 = pneg %p282
        %p467 = pneg %p306
        %p468 = pneg %p303
        %p469 = pneg %p327
        %p470 = pneg %p324
        %p471 = pneg %p353
        %p472 = pneg %p350
        %s473 = sand.u32 %s340, 1
        %s474 = scalar_lea.sflag [#allocation3], %s473
        %s475 = sand.u32 %s340, 1
        %s476 = smul.addr %s475, 32
        %s477 = scalar_lea.vmem [#allocation2], %s476
        %s478 = smul.u32 2, %s28
        %p479 = scmp.lt.s32.totalorder %s478, 5
        %s480 = scalar_select %p479, %s478, 5
        %s481 = smul.addr %s480, 8
        %s482 = scalar_lea.vmem %s0, %s481
        %s483 = smul.u32 2, %s28
        %s484 = smul.u32 2, %s28
        %p485 = scmp.lt.s32.totalorder %s484, 5
        %s486 = scalar_select %p485, %s484, 5
        %s487 = smul.addr %s486, 8
        %s488 = scalar_lea.vmem %s1, %s487
        %s489 = smul.u32 2, %s28
        %s490 = smul.u32 2, %s28
        %v491 = vld [vmem:[%s482] sm:$0xff]
        %v492 = vld [vmem:[%s482 + $0x8] sm:$0xff]
        %v493 = vld [vmem:[%s2] sm:$0xff]
        %v494 = vld [vmem:[%s2 + $0x8] sm:$0xff]
        %v495 = vld [vmem:[%s3] sm:$0x1]
        %v497 = vlaneseq
        %v498 = vshrl.u32 %v497, 7
        %v499 = vsub.s32 0, %v498
        %v500 = vrot.slane %v495, %v499
        %vm502 = vcmask 130048
        %v504 = vsel %vm502, %v491, 0
        %v507 = vsel %vm502, %v492, 0
        %509 = vmatprep.subr.mxu0 0.0
        %510 = vmatpush1.msra.mxu0 %v493
        %511 = vmatprep.subr.mxu0 0.0
        %512 = vmatpush1.msra.mxu0 %v494
        %513 = vmatprep.subr.mxu0 0.0
        %514 = vmatpush1.msra.mxu0 0.0
        %515 = vmatprep.subr.mxu0 0.0
        %516 = vmatpush1.msra.mxu0 0.0
        %517 = vmatprep.subr.mxu0 0.0
        %518 = vmatpush1.msra.mxu0 0.0
        %519 = vmatprep.subr.mxu0 0.0
        %520 = vmatpush1.msra.mxu0 0.0
        %521 = vmatprep.subr.mxu0 0.0
        %522 = vmatpush1.msra.mxu0 0.0
        %523 = vmatprep.subr.mxu0 0.0
        %524 = vmatpush1.msra.mxu0 0.0
        %525 = vmatprep.subr.mxu0 0.0
        %526 = vmatpush1.msra.mxu0 0.0
        %527 = vmatprep.subr.mxu0 0.0
        %528 = vmatpush1.msra.mxu0 0.0
        %529 = vmatprep.subr.mxu0 0.0
        %530 = vmatpush1.msra.mxu0 0.0
        %531 = vmatprep.subr.mxu0 0.0
        %532 = vmatpush1.msra.mxu0 0.0
        %533 = vmatprep.subr.mxu0 0.0
        %534 = vmatpush1.msra.mxu0 0.0
        %535 = vmatprep.subr.mxu0 0.0
        %536 = vmatpush1.msra.mxu0 0.0
        %537 = vmatprep.subr.mxu0 0.0
        %538 = vmatpush1.msra.mxu0 0.0
        %539 = vmatprep.subr.mxu0 0.0
        %540 = vmatpush1.msra.mxu0 0.0
        %541 = vmatprep.subr.mxu0 0.0
        %542 = vmatpush1.msra.mxu0 0.0
        %543 = vmatprep.subr.mxu0 0.0
        %544 = vmatpush1.msra.mxu0 0.0
        %545 = vmatprep.subr.mxu0 0.0
        %546 = vmatpush1.msra.mxu0 0.0
        %547 = vmatprep.subr.mxu0 0.0
        %548 = vmatpush1.msra.mxu0 0.0
        %549 = vmatprep.subr.mxu0 0.0
        %550 = vmatpush1.msra.mxu0 0.0
        %551 = vmatprep.subr.mxu0 0.0
        %552 = vmatpush1.msra.mxu0 0.0
        %553 = vmatprep.subr.mxu0 0.0
        %554 = vmatpush1.msra.mxu0 0.0
        %555 = vmatprep.subr.mxu0 0.0
        %556 = vmatpush1.msra.mxu0 0.0
        %557 = vmatprep.subr.mxu0 0.0
        %558 = vmatpush1.msra.mxu0 0.0
        %559 = vmatprep.subr.mxu0 0.0
        %560 = vmatpush1.msra.mxu0 0.0
        %561 = vmatprep.subr.mxu0 0.0
        %562 = vmatpush1.msra.mxu0 0.0
        %563 = vmatprep.subr.mxu0 0.0
        %564 = vmatpush1.msra.mxu0 0.0
        %565 = vmatprep.subr.mxu0 0.0
        %566 = vmatpush1.msra.mxu0 0.0
        %567 = vmatprep.subr.mxu0 0.0
        %568 = vmatpush1.msra.mxu0 0.0
        %569 = vmatprep.subr.mxu0 0.0
        %570 = vmatpush1.msra.mxu0 0.0
        %571 = vmatprep.subr.mxu0 0.0
        %572 = vmatpush1.msra.mxu0 0.0
        %573 = vmatprep.mubr.f32.mxu0 0.0
        %574 = vmatmul.mubr.f32.gmra.mrb[0].mxu0 %v504
        %v575 = vpop.f32.mrb[0].mxu0
        %v576 = vadd.f32 %v500, %v575
        %v577 = vpop.f32.mrb[0].mxu0
        %578 = vmatprep.mubr.f32.mxu0 0.0
        %579 = vmatmul.mubr.f32.gmra.mrb[0].mxu0 %v507
        %v580 = vpop.f32.mrb[0].mxu0
        %v581 = vadd.f32 %v500, %v580
        %v582 = vpop.f32.mrb[0].mxu0
        %583 = vdwg.mxu0
        %v584 = vtanh.pop %v576
        %v585 = vtanh.pop %v581
        %v586 = vld [vmem:[%s4] sm:$0xff]
        %v587 = vld [vmem:[%s4 + $0x8] sm:$0xff]
        %v588 = vld [vmem:[%s4 + $0x10] sm:$0xf]
        %v589 = vld [vmem:[%s5] sm:$0x1]
        %v591 = vlaneseq
        %v592 = vshrl.u32 %v591, 7
        %v593 = vsub.s32 0, %v592
        %v594 = vrot.slane %v589, %v593
        %vm596 = vcmask 162816
        %v598 = vsel %vm596, %v584, 0
        %v601 = vsel %vm596, %v585, 0
        %vm603 = vcmask 1043456
        %v605 = vsel %vm603, %v588, 0
        %607 = vmatprep.subr.mxu0 0.0
        %608 = vmatpush1.msra.mxu0 %v586
        %609 = vmatprep.subr.mxu0 0.0
        %610 = vmatpush1.msra.mxu0 %v587
        %611 = vmatprep.subr.mxu0 0.0
        %612 = vmatpush1.msra.mxu0 %v605
        %613 = vmatprep.subr.mxu0 0.0
        %614 = vmatpush1.msra.mxu0 0.0
        %615 = vmatprep.subr.mxu0 0.0
        %616 = vmatpush1.msra.mxu0 0.0
        %617 = vmatprep.subr.mxu0 0.0
        %618 = vmatpush1.msra.mxu0 0.0
        %619 = vmatprep.subr.mxu0 0.0
        %620 = vmatpush1.msra.mxu0 0.0
        %621 = vmatprep.subr.mxu0 0.0
        %622 = vmatpush1.msra.mxu0 0.0
        %623 = vmatprep.subr.mxu0 0.0
        %624 = vmatpush1.msra.mxu0 0.0
        %625 = vmatprep.subr.mxu0 0.0
        %626 = vmatpush1.msra.mxu0 0.0
        %627 = vmatprep.subr.mxu0 0.0
        %628 = vmatpush1.msra.mxu0 0.0
        %629 = vmatprep.subr.mxu0 0.0
        %630 = vmatpush1.msra.mxu0 0.0
        %631 = vmatprep.subr.mxu0 0.0
        %632 = vmatpush1.msra.mxu0 0.0
        %633 = vmatprep.subr.mxu0 0.0
        %634 = vmatpush1.msra.mxu0 0.0
        %635 = vmatprep.subr.mxu0 0.0
        %636 = vmatpush1.msra.mxu0 0.0
        %637 = vmatprep.subr.mxu0 0.0
        %638 = vmatpush1.msra.mxu0 0.0
        %639 = vmatprep.subr.mxu0 0.0
        %640 = vmatpush1.msra.mxu0 0.0
        %641 = vmatprep.subr.mxu0 0.0
        %642 = vmatpush1.msra.mxu0 0.0
        %643 = vmatprep.subr.mxu0 0.0
        %644 = vmatpush1.msra.mxu0 0.0
        %645 = vmatprep.subr.mxu0 0.0
        %646 = vmatpush1.msra.mxu0 0.0
        %647 = vmatprep.subr.mxu0 0.0
        %648 = vmatpush1.msra.mxu0 0.0
        %649 = vmatprep.subr.mxu0 0.0
        %650 = vmatpush1.msra.mxu0 0.0
        %651 = vmatprep.subr.mxu0 0.0
        %652 = vmatpush1.msra.mxu0 0.0
        %653 = vmatprep.subr.mxu0 0.0
        %654 = vmatpush1.msra.mxu0 0.0
        %655 = vmatprep.subr.mxu0 0.0
        %656 = vmatpush1.msra.mxu0 0.0
        %657 = vmatprep.subr.mxu0 0.0
        %658 = vmatpush1.msra.mxu0 0.0
        %659 = vmatprep.subr.mxu0 0.0
        %660 = vmatpush1.msra.mxu0 0.0
        %661 = vmatprep.subr.mxu0 0.0
        %662 = vmatpush1.msra.mxu0 0.0
        %663 = vmatprep.subr.mxu0 0.0
        %664 = vmatpush1.msra.mxu0 0.0
        %665 = vmatprep.subr.mxu0 0.0
        %666 = vmatpush1.msra.mxu0 0.0
        %667 = vmatprep.subr.mxu0 0.0
        %668 = vmatpush1.msra.mxu0 0.0
        %669 = vmatprep.subr.mxu0 0.0
        %670 = vmatpush1.msra.mxu0 0.0
        %671 = vmatprep.mubr.f32.mxu0 0.0
        %672 = vmatmul.mubr.f32.gmra.mrb[0].mxu0 %v598
        %v673 = vpop.f32.mrb[0].mxu0
        %v674 = vadd.f32 %v594, %v673
        %v675 = vpop.f32.mrb[0].mxu0
        %676 = vmatprep.mubr.f32.mxu0 0.0
        %677 = vmatmul.mubr.f32.gmra.mrb[0].mxu0 %v601
        %v678 = vpop.f32.mrb[0].mxu0
        %v679 = vadd.f32 %v594, %v678
        %v680 = vpop.f32.mrb[0].mxu0
        %681 = vdwg.mxu0
        %v682 = vtanh.pop %v674
        %v683 = vtanh.pop %v679
        %v684 = vld [vmem:[%s6] sm:$0xff]
        %v685 = vld [vmem:[%s6 + $0x8] sm:$0x7f]
        %v686 = vld [vmem:[%s7] sm:$0x1]
        %v688 = vlaneseq
        %v689 = vshrl.u32 %v688, 7
        %v690 = vsub.s32 0, %v689
        %v691 = vrot.slane %v686, %v690
        %vm693 = vcmask 121856
        %v695 = vsel %vm693, %v682, 0
        %v698 = vsel %vm693, %v683, 0
        %vm700 = vcmask 1046528
        %v702 = vsel %vm700, %v685, 0
        %704 = vmatprep.subr.mxu0 0.0
        %705 = vmatpush1.msra.mxu0 %v684
        %706 = vmatprep.subr.mxu0 0.0
        %707 = vmatpush1.msra.mxu0 %v702
        %708 = vmatprep.subr.mxu0 0.0
        %709 = vmatpush1.msra.mxu0 0.0
        %710 = vmatprep.subr.mxu0 0.0
        %711 = vmatpush1.msra.mxu0 0.0
        %712 = vmatprep.subr.mxu0 0.0
        %713 = vmatpush1.msra.mxu0 0.0
        %714 = vmatprep.subr.mxu0 0.0
        %715 = vmatpush1.msra.mxu0 0.0
        %716 = vmatprep.subr.mxu0 0.0
        %717 = vmatpush1.msra.mxu0 0.0
        %718 = vmatprep.subr.mxu0 0.0
        %719 = vmatpush1.msra.mxu0 0.0
        %720 = vmatprep.subr.mxu0 0.0
        %721 = vmatpush1.msra.mxu0 0.0
        %722 = vmatprep.subr.mxu0 0.0
        %723 = vmatpush1.msra.mxu0 0.0
        %724 = vmatprep.subr.mxu0 0.0
        %725 = vmatpush1.msra.mxu0 0.0
        %726 = vmatprep.subr.mxu0 0.0
        %727 = vmatpush1.msra.mxu0 0.0
        %728 = vmatprep.subr.mxu0 0.0
        %729 = vmatpush1.msra.mxu0 0.0
        %730 = vmatprep.subr.mxu0 0.0
        %731 = vmatpush1.msra.mxu0 0.0
        %732 = vmatprep.subr.mxu0 0.0
        %733 = vmatpush1.msra.mxu0 0.0
        %734 = vmatprep.subr.mxu0 0.0
        %735 = vmatpush1.msra.mxu0 0.0
        %736 = vmatprep.subr.mxu0 0.0
        %737 = vmatpush1.msra.mxu0 0.0
        %738 = vmatprep.subr.mxu0 0.0
        %739 = vmatpush1.msra.mxu0 0.0
        %740 = vmatprep.subr.mxu0 0.0
        %741 = vmatpush1.msra.mxu0 0.0
        %742 = vmatprep.subr.mxu0 0.0
        %743 = vmatpush1.msra.mxu0 0.0
        %744 = vmatprep.subr.mxu0 0.0
        %745 = vmatpush1.msra.mxu0 0.0
        %746 = vmatprep.subr.mxu0 0.0
        %747 = vmatpush1.msra.mxu0 0.0
        %748 = vmatprep.subr.mxu0 0.0
        %749 = vmatpush1.msra.mxu0 0.0
        %750 = vmatprep.subr.mxu0 0.0
        %751 = vmatpush1.msra.mxu0 0.0
        %752 = vmatprep.subr.mxu0 0.0
        %753 = vmatpush1.msra.mxu0 0.0
        %754 = vmatprep.subr.mxu0 0.0
        %755 = vmatpush1.msra.mxu0 0.0
        %756 = vmatprep.subr.mxu0 0.0
        %757 = vmatpush1.msra.mxu0 0.0
        %758 = vmatprep.subr.mxu0 0.0
        %759 = vmatpush1.msra.mxu0 0.0
        %760 = vmatprep.subr.mxu0 0.0
        %761 = vmatpush1.msra.mxu0 0.0
        %762 = vmatprep.subr.mxu0 0.0
        %763 = vmatpush1.msra.mxu0 0.0
        %764 = vmatprep.subr.mxu0 0.0
        %765 = vmatpush1.msra.mxu0 0.0
        %766 = vmatprep.subr.mxu0 0.0
        %767 = vmatpush1.msra.mxu0 0.0
        %768 = vmatprep.mubr.f32.mxu0 0.0
        %769 = vmatmul.mubr.f32.gmra.mrb[0].mxu0 %v695
        %v770 = vpop.f32.mrb[0].mxu0
        %v771 = vadd.f32 %v691, %v770
        %v772 = vpop.f32.mrb[0].mxu0
        %773 = vmatprep.mubr.f32.mxu0 0.0
        %774 = vmatmul.mubr.f32.gmra.mrb[0].mxu0 %v698
        %v775 = vpop.f32.mrb[0].mxu0
        %v776 = vadd.f32 %v691, %v775
        %v777 = vpop.f32.mrb[0].mxu0
        %778 = vdwg.mxu0
        %v779 = vld [vmem:[%s488] sm:$0xff]
        %v780 = vld [vmem:[%s488 + $0x8] sm:$0xff]
        %v781 = vmul.f32 %v771, 0.5
        %v782 = vmul.f32 %v776, 0.5
        %v783 = vmul.f32 %v781, 1.442695
        %v784 = vpow.pop %v783
        %v785 = vmul.f32 %v782, 1.442695
        %v786 = vpow.pop %v785
        %789 = vrot.lane.b32.xlu0 %v784, 113
        %v790 = vpop.permute.xlu0 %789
        %791 = vrot.lane.b32.xlu0 %v786, 113
        %v792 = vpop.permute.xlu0 %791
        %v795 = vmul.f32 %v779, %v790
        %v796 = vmul.f32 %v780, %v792
        %v797 = vadd.f32 %v771, %v795
        %v798 = vadd.f32 %v776, %v796
        %v799 = vld [vmem:[%s8] sm:$0xff]
        %v800 = vld [vmem:[%s8 + $0x8] sm:$0x7f]
        %v801 = vld [vmem:[%s9] sm:$0x1]
        %v803 = vlaneseq
        %v804 = vshrl.u32 %v803, 7
        %v805 = vsub.s32 0, %v804
        %v806 = vrot.slane %v801, %v805
        %v809 = vsel %vm693, %v797, 0
        %v812 = vsel %vm693, %v798, 0
        %v815 = vsel %vm700, %v800, 0
        %817 = vmatprep.subr.mxu0 0.0
        %818 = vmatpush1.msra.mxu0 %v799
        %819 = vmatprep.subr.mxu0 0.0
        %820 = vmatpush1.msra.mxu0 %v815
        %821 = vmatprep.subr.mxu0 0.0
        %822 = vmatpush1.msra.mxu0 0.0
        %823 = vmatprep.subr.mxu0 0.0
        %824 = vmatpush1.msra.mxu0 0.0
        %825 = vmatprep.subr.mxu0 0.0
        %826 = vmatpush1.msra.mxu0 0.0
        %827 = vmatprep.subr.mxu0 0.0
        %828 = vmatpush1.msra.mxu0 0.0
        %829 = vmatprep.subr.mxu0 0.0
        %830 = vmatpush1.msra.mxu0 0.0
        %831 = vmatprep.subr.mxu0 0.0
        %832 = vmatpush1.msra.mxu0 0.0
        %833 = vmatprep.subr.mxu0 0.0
        %834 = vmatpush1.msra.mxu0 0.0
        %835 = vmatprep.subr.mxu0 0.0
        %836 = vmatpush1.msra.mxu0 0.0
        %837 = vmatprep.subr.mxu0 0.0
        %838 = vmatpush1.msra.mxu0 0.0
        %839 = vmatprep.subr.mxu0 0.0
        %840 = vmatpush1.msra.mxu0 0.0
        %841 = vmatprep.subr.mxu0 0.0
        %842 = vmatpush1.msra.mxu0 0.0
        %843 = vmatprep.subr.mxu0 0.0
        %844 = vmatpush1.msra.mxu0 0.0
        %845 = vmatprep.subr.mxu0 0.0
        %846 = vmatpush1.msra.mxu0 0.0
        %847 = vmatprep.subr.mxu0 0.0
        %848 = vmatpush1.msra.mxu0 0.0
        %849 = vmatprep.subr.mxu0 0.0
        %850 = vmatpush1.msra.mxu0 0.0
        %851 = vmatprep.subr.mxu0 0.0
        %852 = vmatpush1.msra.mxu0 0.0
        %853 = vmatprep.subr.mxu0 0.0
        %854 = vmatpush1.msra.mxu0 0.0
        %855 = vmatprep.subr.mxu0 0.0
        %856 = vmatpush1.msra.mxu0 0.0
        %857 = vmatprep.subr.mxu0 0.0
        %858 = vmatpush1.msra.mxu0 0.0
        %859 = vmatprep.subr.mxu0 0.0
        %860 = vmatpush1.msra.mxu0 0.0
        %861 = vmatprep.subr.mxu0 0.0
        %862 = vmatpush1.msra.mxu0 0.0
        %863 = vmatprep.subr.mxu0 0.0
        %864 = vmatpush1.msra.mxu0 0.0
        %865 = vmatprep.subr.mxu0 0.0
        %866 = vmatpush1.msra.mxu0 0.0
        %867 = vmatprep.subr.mxu0 0.0
        %868 = vmatpush1.msra.mxu0 0.0
        %869 = vmatprep.subr.mxu0 0.0
        %870 = vmatpush1.msra.mxu0 0.0
        %871 = vmatprep.subr.mxu0 0.0
        %872 = vmatpush1.msra.mxu0 0.0
        %873 = vmatprep.subr.mxu0 0.0
        %874 = vmatpush1.msra.mxu0 0.0
        %875 = vmatprep.subr.mxu0 0.0
        %876 = vmatpush1.msra.mxu0 0.0
        %877 = vmatprep.subr.mxu0 0.0
        %878 = vmatpush1.msra.mxu0 0.0
        %879 = vmatprep.subr.mxu0 0.0
        %880 = vmatpush1.msra.mxu0 0.0
        %881 = vmatprep.mubr.f32.mxu0 0.0
        %882 = vmatmul.mubr.f32.gmra.mrb[0].mxu0 %v809
        %v883 = vpop.f32.mrb[0].mxu0
        %v884 = vadd.f32 %v806, %v883
        %v885 = vpop.f32.mrb[0].mxu0
        %886 = vmatprep.mubr.f32.mxu0 0.0
        %887 = vmatmul.mubr.f32.gmra.mrb[0].mxu0 %v812
        %v888 = vpop.f32.mrb[0].mxu0
        %v889 = vadd.f32 %v806, %v888
        %v890 = vpop.f32.mrb[0].mxu0
        %891 = vdwg.mxu0
        %v892 = vtanh.pop %v884
        %v893 = vtanh.pop %v889
        %v894 = vld [vmem:[%s10] sm:$0xff]
        %v895 = vld [vmem:[%s10 + $0x8] sm:$0x7f]
        %v896 = vld [vmem:[%s11] sm:$0x1]
        %v898 = vlaneseq
        %v899 = vshrl.u32 %v898, 7
        %v900 = vsub.s32 0, %v899
        %v901 = vrot.slane %v896, %v900
        %v904 = vsel %vm693, %v892, 0
        %v907 = vsel %vm693, %v893, 0
        %v910 = vsel %vm700, %v895, 0
        %912 = vmatprep.subr.mxu0 0.0
        %913 = vmatpush1.msra.mxu0 %v894
        %914 = vmatprep.subr.mxu0 0.0
        %915 = vmatpush1.msra.mxu0 %v910
        %916 = vmatprep.subr.mxu0 0.0
        %917 = vmatpush1.msra.mxu0 0.0
        %918 = vmatprep.subr.mxu0 0.0
        %919 = vmatpush1.msra.mxu0 0.0
        %920 = vmatprep.subr.mxu0 0.0
        %921 = vmatpush1.msra.mxu0 0.0
        %922 = vmatprep.subr.mxu0 0.0
        %923 = vmatpush1.msra.mxu0 0.0
        %924 = vmatprep.subr.mxu0 0.0
        %925 = vmatpush1.msra.mxu0 0.0
        %926 = vmatprep.subr.mxu0 0.0
        %927 = vmatpush1.msra.mxu0 0.0
        %928 = vmatprep.subr.mxu0 0.0
        %929 = vmatpush1.msra.mxu0 0.0
        %930 = vmatprep.subr.mxu0 0.0
        %931 = vmatpush1.msra.mxu0 0.0
        %932 = vmatprep.subr.mxu0 0.0
        %933 = vmatpush1.msra.mxu0 0.0
        %934 = vmatprep.subr.mxu0 0.0
        %935 = vmatpush1.msra.mxu0 0.0
        %936 = vmatprep.subr.mxu0 0.0
        %937 = vmatpush1.msra.mxu0 0.0
        %938 = vmatprep.subr.mxu0 0.0
        %939 = vmatpush1.msra.mxu0 0.0
        %940 = vmatprep.subr.mxu0 0.0
        %941 = vmatpush1.msra.mxu0 0.0
        %942 = vmatprep.subr.mxu0 0.0
        %943 = vmatpush1.msra.mxu0 0.0
        %944 = vmatprep.subr.mxu0 0.0
        %945 = vmatpush1.msra.mxu0 0.0
        %946 = vmatprep.subr.mxu0 0.0
        %947 = vmatpush1.msra.mxu0 0.0
        %948 = vmatprep.subr.mxu0 0.0
        %949 = vmatpush1.msra.mxu0 0.0
        %950 = vmatprep.subr.mxu0 0.0
        %951 = vmatpush1.msra.mxu0 0.0
        %952 = vmatprep.subr.mxu0 0.0
        %953 = vmatpush1.msra.mxu0 0.0
        %954 = vmatprep.subr.mxu0 0.0
        %955 = vmatpush1.msra.mxu0 0.0
        %956 = vmatprep.subr.mxu0 0.0
        %957 = vmatpush1.msra.mxu0 0.0
        %958 = vmatprep.subr.mxu0 0.0
        %959 = vmatpush1.msra.mxu0 0.0
        %960 = vmatprep.subr.mxu0 0.0
        %961 = vmatpush1.msra.mxu0 0.0
        %962 = vmatprep.subr.mxu0 0.0
        %963 = vmatpush1.msra.mxu0 0.0
        %964 = vmatprep.subr.mxu0 0.0
        %965 = vmatpush1.msra.mxu0 0.0
        %966 = vmatprep.subr.mxu0 0.0
        %967 = vmatpush1.msra.mxu0 0.0
        %968 = vmatprep.subr.mxu0 0.0
        %969 = vmatpush1.msra.mxu0 0.0
        %970 = vmatprep.subr.mxu0 0.0
        %971 = vmatpush1.msra.mxu0 0.0
        %972 = vmatprep.subr.mxu0 0.0
        %973 = vmatpush1.msra.mxu0 0.0
        %974 = vmatprep.subr.mxu0 0.0
        %975 = vmatpush1.msra.mxu0 0.0
        %976 = vmatprep.mubr.f32.mxu0 0.0
        %977 = vmatmul.mubr.f32.gmra.mrb[0].mxu0 %v904
        %v978 = vpop.f32.mrb[0].mxu0
        %v979 = vadd.f32 %v901, %v978
        %v980 = vpop.f32.mrb[0].mxu0
        %981 = vmatprep.mubr.f32.mxu0 0.0
        %982 = vmatmul.mubr.f32.gmra.mrb[0].mxu0 %v907
        %v983 = vpop.f32.mrb[0].mxu0
        %v984 = vadd.f32 %v901, %v983
        %v985 = vpop.f32.mrb[0].mxu0
        %986 = vdwg.mxu0
        %v987 = vtanh.pop %v979
        %v988 = vtanh.pop %v984
        %v989 = vld [vmem:[%s12] sm:$0xff]
        %v990 = vld [vmem:[%s12 + $0x8] sm:$0xff]
        %v991 = vld [vmem:[%s12 + $0x10] sm:$0xf]
        %v992 = vld [vmem:[%s13] sm:$0x1]
        %v994 = vlaneseq
        %v995 = vshrl.u32 %v994, 7
        %v996 = vsub.s32 0, %v995
        %v997 = vrot.slane %v992, %v996
        %v1000 = vsel %vm596, %v987, 0
        %v1003 = vsel %vm596, %v988, 0
        %v1006 = vsel %vm603, %v991, 0
        %1008 = vmatprep.subr.mxu0 0.0
        %1009 = vmatpush1.msra.mxu0 %v989
        %1010 = vmatprep.subr.mxu0 0.0
        %1011 = vmatpush1.msra.mxu0 %v990
        %1012 = vmatprep.subr.mxu0 0.0
        %1013 = vmatpush1.msra.mxu0 %v1006
        %1014 = vmatprep.subr.mxu0 0.0
        %1015 = vmatpush1.msra.mxu0 0.0
        %1016 = vmatprep.subr.mxu0 0.0
        %1017 = vmatpush1.msra.mxu0 0.0
        %1018 = vmatprep.subr.mxu0 0.0
        %1019 = vmatpush1.msra.mxu0 0.0
        %1020 = vmatprep.subr.mxu0 0.0
        %1021 = vmatpush1.msra.mxu0 0.0
        %1022 = vmatprep.subr.mxu0 0.0
        %1023 = vmatpush1.msra.mxu0 0.0
        %1024 = vmatprep.subr.mxu0 0.0
        %1025 = vmatpush1.msra.mxu0 0.0
        %1026 = vmatprep.subr.mxu0 0.0
        %1027 = vmatpush1.msra.mxu0 0.0
        %1028 = vmatprep.subr.mxu0 0.0
        %1029 = vmatpush1.msra.mxu0 0.0
        %1030 = vmatprep.subr.mxu0 0.0
        %1031 = vmatpush1.msra.mxu0 0.0
        %1032 = vmatprep.subr.mxu0 0.0
        %1033 = vmatpush1.msra.mxu0 0.0
        %1034 = vmatprep.subr.mxu0 0.0
        %1035 = vmatpush1.msra.mxu0 0.0
        %1036 = vmatprep.subr.mxu0 0.0
        %1037 = vmatpush1.msra.mxu0 0.0
        %1038 = vmatprep.subr.mxu0 0.0
        %1039 = vmatpush1.msra.mxu0 0.0
        %1040 = vmatprep.subr.mxu0 0.0
        %1041 = vmatpush1.msra.mxu0 0.0
        %1042 = vmatprep.subr.mxu0 0.0
        %1043 = vmatpush1.msra.mxu0 0.0
        %1044 = vmatprep.subr.mxu0 0.0
        %1045 = vmatpush1.msra.mxu0 0.0
        %1046 = vmatprep.subr.mxu0 0.0
        %1047 = vmatpush1.msra.mxu0 0.0
        %1048 = vmatprep.subr.mxu0 0.0
        %1049 = vmatpush1.msra.mxu0 0.0
        %1050 = vmatprep.subr.mxu0 0.0
        %1051 = vmatpush1.msra.mxu0 0.0
        %1052 = vmatprep.subr.mxu0 0.0
        %1053 = vmatpush1.msra.mxu0 0.0
        %1054 = vmatprep.subr.mxu0 0.0
        %1055 = vmatpush1.msra.mxu0 0.0
        %1056 = vmatprep.subr.mxu0 0.0
        %1057 = vmatpush1.msra.mxu0 0.0
        %1058 = vmatprep.subr.mxu0 0.0
        %1059 = vmatpush1.msra.mxu0 0.0
        %1060 = vmatprep.subr.mxu0 0.0
        %1061 = vmatpush1.msra.mxu0 0.0
        %1062 = vmatprep.subr.mxu0 0.0
        %1063 = vmatpush1.msra.mxu0 0.0
        %1064 = vmatprep.subr.mxu0 0.0
        %1065 = vmatpush1.msra.mxu0 0.0
        %1066 = vmatprep.subr.mxu0 0.0
        %1067 = vmatpush1.msra.mxu0 0.0
        %1068 = vmatprep.subr.mxu0 0.0
        %1069 = vmatpush1.msra.mxu0 0.0
        %1070 = vmatprep.subr.mxu0 0.0
        %1071 = vmatpush1.msra.mxu0 0.0
        %1072 = vmatprep.mubr.f32.mxu0 0.0
        %1073 = vmatmul.mubr.f32.gmra.mrb[0].mxu0 %v1000
        %v1074 = vpop.f32.mrb[0].mxu0
        %v1075 = vadd.f32 %v997, %v1074
        %v1076 = vpop.f32.mrb[0].mxu0
        %1077 = vmatprep.mubr.f32.mxu0 0.0
        %1078 = vmatmul.mubr.f32.gmra.mrb[0].mxu0 %v1003
        %v1079 = vpop.f32.mrb[0].mxu0
        %v1080 = vadd.f32 %v997, %v1079
        %v1081 = vpop.f32.mrb[0].mxu0
        %1082 = vdwg.mxu0
        %v1083 = vxor.u32 %v1075, 2147483648
        %v1084 = vxor.u32 %v1080, 2147483648
        %v1085 = vmul.f32 %v1083, 1.442695
        %v1086 = vpow.pop %v1085
        %v1087 = vmul.f32 %v1084, 1.442695
        %v1088 = vpow.pop %v1087
        %v1089 = vadd.f32 %v1086, 1.0
        %v1090 = vadd.f32 %v1088, 1.0
        %v1091 = vrcp.pop %v1089
        %v1092 = vmul.f32 1.0, %v1091
        %v1093 = vrcp.pop %v1090
        %v1094 = vmul.f32 1.0, %v1093
        %1095 = vrot.lane.b32.xlu0 %v682, 20
        %v1096 = vpop.permute.xlu0 %1095
        %1097 = vrot.lane.b32.xlu0 %v683, 20
        %v1098 = vpop.permute.xlu0 %1097
        %1103 = vrot.lane.b32.xlu0 %v771, 35
        %v1104 = vpop.permute.xlu0 %1103
        %1105 = vrot.lane.b32.xlu0 %v776, 35
        %v1106 = vpop.permute.xlu0 %1105
        %1109 = vrot.lane.b32.xlu0 %v797, 65
        %v1110 = vpop.permute.xlu0 %1109
        %1111 = vrot.lane.b32.xlu0 %v798, 65
        %v1112 = vpop.permute.xlu0 %1111
        %1117 = vrot.lane.b32.xlu0 %v884, 80
        %v1118 = vpop.permute.xlu0 %1117
        %1119 = vrot.lane.b32.xlu0 %v889, 80
        %v1120 = vpop.permute.xlu0 %1119
        %1125 = vrot.lane.b32.xlu0 %v979, 95
        %v1126 = vpop.permute.xlu0 %1125
        %1127 = vrot.lane.b32.xlu0 %v984, 95
        %v1128 = vpop.permute.xlu0 %1127
        %1133 = vrot.lane.b32.xlu0 %v1092, 115
        %v1134 = vpop.permute.xlu0 %1133
        %1135 = vrot.lane.b32.xlu0 %v1094, 115
        %v1136 = vpop.permute.xlu0 %1135
        %v1139 = vsel %vm596, %v576, %v1096
        %v1140 = vsel %vm596, %v581, %v1098
        %vm1141 = vcmask 285696
        %v1142 = vsel %vm1141, %v1139, %v1104
        %v1143 = vsel %vm1141, %v1140, %v1106
        %vm1144 = vcmask 408576
        %v1145 = vsel %vm1144, %v1142, %v1104
        %v1146 = vsel %vm1144, %v1143, %v1106
        %vm1147 = vcmask 531456
        %v1148 = vsel %vm1147, %v1145, %v1110
        %v1149 = vsel %vm1147, %v1146, %v1112
        %vm1150 = vcmask 654336
        %v1151 = vsel %vm1150, %v1148, %v1118
        %v1152 = vsel %vm1150, %v1149, %v1120
        %vm1153 = vcmask 777216
        %v1154 = vsel %vm1153, %v1151, %v1126
        %v1155 = vsel %vm1153, %v1152, %v1128
        %vm1156 = vcmask 941056
        %v1157 = vsel %vm1156, %v1154, %v1134
        %v1158 = vsel %vm1156, %v1155, %v1136
        %vm1159 = vcmask 23552
        %v1160 = vsel %vm1159, %v1134, 0.0
        %v1161 = vsel %vm1159, %v1136, 0.0
        %1162 = vst [vmem:[%s477] sm:$0xff] %v1157
        %1163 = vst [vmem:[%s477 + $0x8] sm:$0xff] %v1160
        %1164 = vst [vmem:[%s477 + $0x10] sm:$0xff] %v1158
        %1165 = vst [vmem:[%s477 + $0x18] sm:$0xff] %v1161
        %s1166 = sand.u32 %s340, 1
        %s1167 = scalar_lea.sflag [#allocation3], %s1166
        %s1168 = sand.u32 %s340, 1
        %s1169 = smul.addr %s1168, 32
        %s1170 = scalar_lea.vmem [#allocation2], %s1169
        // Predicated region
        $region77: #{tpu_custom_call.1} parent=75 // pred_check
          %p1171 = pneg %p350
        $region78: #{tpu_custom_call.1} parent=75 // pred_check_branch
          %1173 = sbr.rel (%p1171) target = $region80
        $region79: #{tpu_custom_call.1} parent=75 // pred_region
          %s1174 = smul.u32 2, %s28
          %s1176 = ssub.s32 512, 512
          %1177 = vsyncadd %s1167, %s1176
          %s1178 = smul.addr %s1174, 2
          %s1179 = smul.addr %s1178, 128
          %s1180 = scalar_lea.hbm %s14, %s1179
          %s1181 = sshll.u32 %s1170, 4
          %s1182 = int_to_ptr.vmem [resolvable:$true] %s1181
          %1187 = dma.vmem_to_hbm [thread:$0]  %s1182, 512, %s1180, %s1167, 256, 256, 16
        $region80: #{tpu_custom_call.1} parent=75 // pred_fallthru
          _
      $region76: #{tpu_custom_call.1} parent=5 // pred_fallthru
        _
      %p1188 = scmp.le.s32.totalorder 2, %s23
      // Predicated region
      $region81: #{tpu_custom_call.1} parent=5 // pred_check
        %p1189 = pneg %p1188
      $region82: #{tpu_custom_call.1} parent=5 // pred_check_branch
        %1191 = sbr.rel (%p1189) target = $region84
      $region83: #{tpu_custom_call.1} parent=5 // pred_region
        %s1192 = ssub.s32 %s23, 2
        // Predicated region
        $region85: #{tpu_custom_call.1} parent=83 // pred_check
          %p1193 = pneg %p356
        $region86: #{tpu_custom_call.1} parent=83 // pred_check_branch
          %1195 = sbr.rel (%p1193) target = $region88
        $region87: #{tpu_custom_call.1} parent=83 // pred_region
          %s1196 = sand.u32 %s341, 1
          %s1197 = scalar_lea.sflag [#allocation3], %s1196
          %s1198 = sand.u32 %s341, 1
          %s1199 = smul.addr %s1198, 32
          %s1200 = scalar_lea.vmem [#allocation2], %s1199
          %1201 = dma.done %s1197, 512
        $region88: #{tpu_custom_call.1} parent=83 // pred_fallthru
          _
      $region84: #{tpu_custom_call.1} parent=5 // pred_fallthru
        _
    $region6: #{tpu_custom_call.1} parent=1 // loop_footer
      %s27 = sadd.s32 1, %s23
    $region7: #{tpu_custom_call.1} parent=1 // loop_footer_branch
      %22 = sbr.rel target = $region3
    $region8: #{tpu_custom_call.1} parent=1 // loop_exit
      _
    %1202 = vsyncpa [#allocation3], 1
    %s1203 = scalar_lea.sflag [#allocation3], 1
    %1204 = vsyncpa %s1203, 1

</llo_original>
